<compile_context>
chip_gen: v7x
topology: tpu7x:2x2x1
jax: 0.10.0
libtpu: 0.0.40
codegen_flags: <defaults>
</compile_context>

<pallas_src>
import jax
import jax.numpy as jnp
from jax import lax
from jax.experimental import pallas as pl
from jax.experimental.pallas import tpu as pltpu

N_EMBD = 384  # matches gpt.py


# ---------------------------------------------------------------------------
# Kernel
# ---------------------------------------------------------------------------
def _head_kernel(x_ref, wqkv_ref, o_ref):
    # x_ref:    (Bt*T, C)   -- batch tile flattened into matmul rows
    # wqkv_ref: (C, 3H)     -- [W_q * H^-0.5 | W_k | W_v]
    # o_ref:    (Bt, T, H)
    Bt, T, H = o_ref.shape

    x = x_ref[...]          # keep input dtype (bf16-native MXU if caller uses bf16)
    w = wqkv_ref[...]

    # Fused QKV projection: one MXU pass, M = Bt*T, N = 3H, f32 accumulation.
    qkv = jnp.dot(x, w, preferred_element_type=jnp.float32)        # (Bt*T, 3H)
    qkv = qkv.reshape(Bt, T, 3 * H)                                 # split batch tile

    cdt = x_ref.dtype       # MXU operand dtype for the attention matmuls
    # 1/sqrt(H) scale was folded into the query weights at prep time.
    q = qkv[:, :, 0:H].astype(cdt)
    k = qkv[:, :, H:2 * H].astype(cdt)
    v = qkv[:, :, 2 * H:3 * H].astype(cdt)

    # Scores: batched q @ k^T without materializing a transpose of k.
    wei = lax.dot_general(
        q, k,
        dimension_numbers=(((2,), (2,)), ((0,), (0,))),
        preferred_element_type=jnp.float32)                         # (Bt, T, T)

    # Causal (lower-triangular) mask, built once at (T, T) and broadcast.
    row = lax.broadcasted_iota(jnp.int32, (T, T), 0)
    col = lax.broadcasted_iota(jnp.int32, (T, T), 1)
    causal = (col <= row)[None, :, :]                               # (1, T, T)
    wei = jnp.where(causal, wei, -jnp.inf)

    # Numerically stable softmax in f32; reciprocal on the EUP slot.
    wei = jnp.exp(wei - jnp.max(wei, axis=-1, keepdims=True))
    wei = wei * pl.reciprocal(jnp.sum(wei, axis=-1, keepdims=True), approx=True)

    # Dropout: eval mode => identity.

    out = lax.dot_general(
        wei.astype(cdt), v,
        dimension_numbers=(((2,), (1,)), ((0,), (0,))),
        preferred_element_type=jnp.float32)                         # (Bt, T, H)

    o_ref[...] = out.astype(o_ref.dtype)


# ---------------------------------------------------------------------------
# Tile selection / VMEM budgeting
# ---------------------------------------------------------------------------
def _vmem_capacity_bytes():
    """Physical per-TensorCore VMEM; falls back to the v7x 64 MiB lower bound."""
    try:
        info = pltpu.get_tpu_info()
        cap = getattr(info, "vmem_capacity_bytes", None)
        if cap:
            return int(cap)
    except Exception:
        pass
    return 64 * 1024 * 1024


def _estimate_vmem_bytes(bt, T, C, H, itemsize):
    """Conservative per-grid-step VMEM estimate (blocks double-buffered +
    f32 intermediates materialized inside the kernel)."""
    rows = bt * T
    x_block = 2 * rows * C * itemsize          # input tile (double-buffered)
    w_block = 2 * C * 3 * H * itemsize         # fused weight tile
    o_block = 2 * rows * H * itemsize          # output tile
    qkv_f32 = rows * 3 * H * 4                 # projection accumulation
    qkv_cst = rows * 3 * H * itemsize          # q/k/v operand casts
    wei_f32 = 2 * bt * T * T * 4               # scores + exp intermediate
    wei_cst = bt * T * T * itemsize            # cast for wei @ v
    acc_f32 = rows * H * 4                     # output accumulation
    return (x_block + w_block + o_block + qkv_f32 + qkv_cst
            + wei_f32 + wei_cst + acc_f32)


def _pick_b_tile(B, T, C, H, itemsize, vmem_budget, *, target_rows=2048):
    """Largest divisor of B with b_tile*T <= ~target_rows that fits the VMEM
    budget; prefers keeping >= 2 grid steps (v7x megacore) as long as the
    tile stays >= 512 rows (measured HBM-roofline plateau)."""
    def fits(d):
        return (d * T <= max(target_rows, T)
                and _estimate_vmem_bytes(d, T, C, H, itemsize) <= vmem_budget)

    divisors = [d for d in range(1, B + 1) if B % d == 0 and fits(d)]
    if not divisors:
        return 1
    best = max(divisors)
    if B // best < 2:
        alts = [d for d in divisors if B // d >= 2 and d * T >= 512]
        if alts:
            best = max(alts)
    return best


# ---------------------------------------------------------------------------
# Wrappers
# ---------------------------------------------------------------------------
def prepare_qkv_weight(w_key, w_query, w_value, *, dtype=None):
    """Build the fused (C, 3H) projection operand [W_q/sqrt(H) | W_k | W_v].

    Call this once (outside the per-step path) so the concat / scale / cast
    are hoisted out of repeated forward calls. Weights are (C, head_size),
    i.e. the transpose of nn.Linear.weight.
    """
    H = w_key.shape[-1]
    scale = H ** (-0.5)
    w_qkv = jnp.concatenate([w_query * scale, w_key, w_value], axis=1)
    if dtype is not None:
        w_qkv = w_qkv.astype(dtype)
    return w_qkv


def head_forward_fused(x, w_qkv, *, b_tile=None):
    """x: (B, T, C); w_qkv: (C, 3H) from prepare_qkv_weight. Returns (B, T, H).

    For best performance pass x (and w_qkv) in bf16 from the upstream
    producer — no activation cast is inserted here.
    """
    B, T, C = x.shape
    assert w_qkv.shape[0] == C and w_qkv.shape[1] % 3 == 0
    H = w_qkv.shape[1] // 3

    itemsize = jnp.dtype(x.dtype).itemsize
    vmem_cap = _vmem_capacity_bytes()
    vmem_budget = int(vmem_cap * 0.75)

    if b_tile is None:
        b_tile = _pick_b_tile(B, T, C, H, itemsize, vmem_budget)
    assert B % b_tile == 0

    est = _estimate_vmem_bytes(b_tile, T, C, H, itemsize)
    vmem_limit = int(min(vmem_cap - (4 << 20),
                         max(32 << 20, int(est * 1.3) + (4 << 20))))

    # Fold batch into matmul rows (free, layout-preserving reshape).
    x2 = x.reshape(B * T, C)

    return pl.pallas_call(
        _head_kernel,
        out_shape=jax.ShapeDtypeStruct((B, T, H), x.dtype),
        grid_spec=pltpu.PrefetchScalarGridSpec(
            num_scalar_prefetch=0,
            grid=(B // b_tile,),
            in_specs=[
                pl.BlockSpec((b_tile * T, C), lambda b: (b, 0)),
                pl.BlockSpec((C, 3 * H), lambda b: (0, 0)),
            ],
            out_specs=pl.BlockSpec((b_tile, T, H), lambda b: (b, 0, 0)),
        ),
        compiler_params=pltpu.CompilerParams(
            dimension_semantics=("parallel",),
            vmem_limit_bytes=vmem_limit),
    )(x2, w_qkv)


def head_forward(x, w_key, w_query, w_value, *, b_tile=None):
    """Convenience wrapper: x: (B, T, C); w_*: (C, head_size) = nn.Linear.weight.T."""
    w_qkv = prepare_qkv_weight(w_key, w_query, w_value, dtype=x.dtype)
    return head_forward_fused(x, w_qkv, b_tile=b_tile)


def head_reference(x, w_key, w_query, w_value):
    """Pure-JAX reference mirroring the PyTorch forward (eval mode)."""
    k = x @ w_key
    q = x @ w_query
    v = x @ w_value
    H = k.shape[-1]
    wei = (q @ jnp.swapaxes(k, -2, -1)) * H ** (-0.5)
    T = x.shape[1]
    tril = jnp.tril(jnp.ones((T, T), dtype=bool))
    wei = jnp.where(tril, wei, -jnp.inf)
    wei = jax.nn.softmax(wei, axis=-1)
    return wei @ v


if __name__ == "__main__":
    key = jax.random.PRNGKey(0)
    B, T, C, head_size = 2, 8, N_EMBD, 64

    kx, kk, kq, kv = jax.random.split(key, 4)
    x = jax.random.normal(kx, (B, T, C), dtype=jnp.float32)
    # Deterministic bias-free linear weights, stored as (C, head_size) so the
    # kernel computes x @ W directly (transpose of nn.Linear.weight).
    s = 1.0 / (C ** 0.5)
    w_key = jax.random.uniform(kk, (C, head_size), jnp.float32, -s, s)
    w_query = jax.random.uniform(kq, (C, head_size), jnp.float32, -s, s)
    w_value = jax.random.uniform(kv, (C, head_size), jnp.float32, -s, s)

    out = head_forward(x, w_key, w_query, w_value)
    out = jax.block_until_ready(out)

    ref = head_reference(x, w_key, w_query, w_value)
    assert out.shape == (B, T, head_size)
    # Tolerance relaxed slightly vs exact-f32 because the softmax denominator
    # uses the EUP approximate reciprocal (relative error ~1e-4).
    assert jnp.allclose(out, ref, atol=2e-3, rtol=2e-3), "mismatch vs reference"

    print("KERNEL_OK")
</pallas_src>

<mosaic_0001>
module attributes {stable_mosaic.version = 11 : i64} {
  func.func @_head_kernel(%arg0: i32, %arg1: memref<16x384xf32, #tpu.memory_space<vmem>>, %arg2: memref<384x192xf32, #tpu.memory_space<vmem>>, %arg3: memref<2x8x64xf32, #tpu.memory_space<vmem>>) attributes {dimension_semantics = [#tpu.dimension_semantics<parallel>], iteration_bounds = array<i64: 1>, scalar_prefetch = 0 : i64, scratch_operands = 0 : i64, tpu.core_type = #tpu.core_type<tc>, window_params = [{transform_indices = @transform_0, window_bounds = array<i64: 16, 384>}, {pipeline_mode = #tpu.pipeline_mode<synchronous>, transform_indices = @transform_1, window_bounds = array<i64: 384, 192>}, {transform_indices = @transform_2, window_bounds = array<i64: 2, 8, 64>}]} {
    %c0 = arith.constant 0 : index
    %c0_0 = arith.constant 0 : index
    %0 = vector.load %arg1[%c0, %c0_0] : memref<16x384xf32, #tpu.memory_space<vmem>>, vector<16x384xf32>
    %c0_1 = arith.constant 0 : index
    %c0_2 = arith.constant 0 : index
    %1 = vector.load %arg2[%c0_1, %c0_2] : memref<384x192xf32, #tpu.memory_space<vmem>>, vector<384x192xf32>
    %cst = arith.constant dense<0.000000e+00> : vector<16x192xf32>
    %2 = tpu.matmul %0, %1, %cst {dimension_numbers = #tpu.dot_dimension_numbers<[1], [0], [0], [1], [0, 0, 1, 1], [], []>} : vector<16x384xf32>, vector<384x192xf32>, vector<16x192xf32> -> vector<16x192xf32>
    %3 = vector.shape_cast %2 : vector<16x192xf32> to vector<2x8x192xf32>
    %4 = vector.extract_strided_slice %3 {offsets = [0, 0, 0], sizes = [2, 8, 64], strides = [1, 1, 1]} : vector<2x8x192xf32> to vector<2x8x64xf32>
    %5 = vector.extract_strided_slice %3 {offsets = [0, 0, 64], sizes = [2, 8, 64], strides = [1, 1, 1]} : vector<2x8x192xf32> to vector<2x8x64xf32>
    %6 = vector.extract_strided_slice %3 {offsets = [0, 0, 128], sizes = [2, 8, 64], strides = [1, 1, 1]} : vector<2x8x192xf32> to vector<2x8x64xf32>
    %cst_3 = arith.constant dense<0.000000e+00> : vector<2x8x8xf32>
    %7 = tpu.matmul %4, %5, %cst_3 {dimension_numbers = #tpu.dot_dimension_numbers<[2], [2], [1], [1], [0, 0, 0, 1, 1, 1], [0], [0]>} : vector<2x8x64xf32>, vector<2x8x64xf32>, vector<2x8x8xf32> -> vector<2x8x8xf32>
    %8 = tpu.iota {dimensions = array<i32: 0>} : vector<8x8xi32>
    %9 = tpu.iota {dimensions = array<i32: 1>} : vector<8x8xi32>
    %10 = arith.cmpi sle, %9, %8 : vector<8x8xi32>
    %11 = vector.shape_cast %10 : vector<8x8xi1> to vector<1x8x8xi1>
    %cst_4 = arith.constant 0xFF800000 : f32
    %12 = vector.shape_cast %11 : vector<1x8x8xi1> to vector<1x8x8xi1>
    %13 = vector.broadcast %12 : vector<1x8x8xi1> to vector<2x8x8xi1>
    %14 = vector.broadcast %cst_4 : f32 to vector<2x8x8xf32>
    %15 = arith.select %13, %7, %14 : vector<2x8x8xi1>, vector<2x8x8xf32>
    %cst_5 = arith.constant dense<0xFF800000> : vector<2x8xf32>
    %16 = vector.multi_reduction <maximumf>, %15, %cst_5 [2] : vector<2x8x8xf32> to vector<2x8xf32>
    %17 = vector.shape_cast %16 : vector<2x8xf32> to vector<2x8x1xf32>
    %18 = vector.broadcast %17 : vector<2x8x1xf32> to vector<2x8x8xf32>
    %19 = arith.subf %15, %18 : vector<2x8x8xf32>
    %20 = math.exp %19 : vector<2x8x8xf32>
    %cst_6 = arith.constant dense<0.000000e+00> : vector<2x8xf32>
    %21 = vector.multi_reduction <add>, %20, %cst_6 [2] : vector<2x8x8xf32> to vector<2x8xf32>
    %22 = vector.shape_cast %21 : vector<2x8xf32> to vector<2x8x1xf32>
    %23 = tpu.reciprocal %22 {approx = true} : vector<2x8x1xf32> -> vector<2x8x1xf32>
    %24 = vector.broadcast %23 : vector<2x8x1xf32> to vector<2x8x8xf32>
    %25 = arith.mulf %20, %24 : vector<2x8x8xf32>
    %cst_7 = arith.constant dense<0.000000e+00> : vector<2x8x64xf32>
    %26 = tpu.matmul %25, %6, %cst_7 {dimension_numbers = #tpu.dot_dimension_numbers<[2], [1], [1], [2], [0, 0, 0, 1, 1, 2], [0], [0]>} : vector<2x8x8xf32>, vector<2x8x64xf32>, vector<2x8x64xf32> -> vector<2x8x64xf32>
    %c0_8 = arith.constant 0 : index
    %c0_9 = arith.constant 0 : index
    %c0_10 = arith.constant 0 : index
    %27 = vector.load %arg3[%c0_8, %c0_9, %c0_10] : memref<2x8x64xf32, #tpu.memory_space<vmem>>, vector<2x8x64xf32>
    tpu.vector_store %arg3[%c0_8, %c0_9, %c0_10], %26 {strides = array<i32>} : memref<2x8x64xf32, #tpu.memory_space<vmem>>, vector<2x8x64xf32>,
    return
  }
  func.func @transform_0(%arg0: i32) -> (i32, i32) {
    %c0_i32 = arith.constant 0 : i32
    %c0_i32_0 = arith.constant 0 : i32
    return %arg0, %c0_i32 : i32, i32
  }
  func.func @transform_1(%arg0: i32) -> (i32, i32) {
    %c0_i32 = arith.constant 0 : i32
    %c0_i32_0 = arith.constant 0 : i32
    %c0_i32_1 = arith.constant 0 : i32
    return %c0_i32, %c0_i32_0 : i32, i32
  }
  func.func @transform_2(%arg0: i32) -> (i32, i32, i32) {
    %c0_i32 = arith.constant 0 : i32
    %c0_i32_0 = arith.constant 0 : i32
    %c0_i32_1 = arith.constant 0 : i32
    return %arg0, %c0_i32, %c0_i32_0 : i32, i32, i32
  }
}

</mosaic_0001>

<llo_original>
// kernel: tpu_custom_call.1
$region0: #{tpu_custom_call.1}
  #allocation0 [shape = 'u32[]', space=smem, size = 0x4, offset = 0x4, fixed_abs, tag = 'smem constant byte address 0x4 - core index']
  #allocation1 [shape = 'u32[144,128]{1,0:T(1,128)}', space=vmem, size = 0x12000, scoped, tag = 'internal scratch']
  %s0 = inlined_call_operand.vmem [shape: f32[16,384], index: 0, kind: input, shape index: {}]
  %s1 = inlined_call_operand.vmem [shape: f32[384,192], index: 1, kind: input, shape index: {}]
  %s2 = inlined_call_operand.hbm [shape: f32[2,8,64], index: 2, kind: output, shape index: {}]
  %s3 = sld [smem:[#allocation0]]
  $region18: #{tpu_custom_call.1} parent=0
    _
  %s5 = ssub.s32 1, %s3
  %s6 = scalar_select 0, %s5, %s3
  $region1: #{tpu_custom_call.1} parent=0
    #allocation2 [shape = 'u8[8192]{0}', space=vmem, size = 0x2000, scoped, tag = 'output window, operand 0, single buffered']
    #allocation3 [shape = 's32[1]{0}', space=sflag, size = 0x4, scoped, tag = 'scoped memory for tpu_custom_call.1']
    %7 = vsyncpa [#allocation3], 0
    // Predicated region
    $region2: #{tpu_custom_call.1} parent=1 // pred_check
      _
    $region3: #{tpu_custom_call.1} parent=1 // pred_check_branch
      %9 = sbr.rel (0) target = $region5
    $region4: #{tpu_custom_call.1} parent=1 // pred_region
      _
    $region5: #{tpu_custom_call.1} parent=1 // pred_fallthru
      _
    // Predicated region
    $region6: #{tpu_custom_call.1} parent=1 // pred_check
      _
    $region7: #{tpu_custom_call.1} parent=1 // pred_check_branch
      %11 = sbr.rel (0) target = $region9
    $region8: #{tpu_custom_call.1} parent=1 // pred_region
      _
    $region9: #{tpu_custom_call.1} parent=1 // pred_fallthru
      _
    %v12 = vld [vmem:[%s0] sm:$0xff]
    %v13 = vld [vmem:[%s0 + $0x8] sm:$0xff]
    %v14 = vld [vmem:[%s0 + $0x10] sm:$0xff]
    %v15 = vld [vmem:[%s0 + $0x18] sm:$0xff]
    %v16 = vld [vmem:[%s0 + $0x20] sm:$0xff]
    %v17 = vld [vmem:[%s0 + $0x28] sm:$0xff]
    %v18 = vld [vmem:[%s1] sm:$0xff]
    %v19 = vld [vmem:[%s1 + $0x8] sm:$0xff]
    %v20 = vld [vmem:[%s1 + $0x10] sm:$0xff]
    %v21 = vld [vmem:[%s1 + $0x18] sm:$0xff]
    %v22 = vld [vmem:[%s1 + $0x20] sm:$0xff]
    %v23 = vld [vmem:[%s1 + $0x28] sm:$0xff]
    %v24 = vld [vmem:[%s1 + $0x30] sm:$0xff]
    %v25 = vld [vmem:[%s1 + $0x38] sm:$0xff]
    %v26 = vld [vmem:[%s1 + $0x40] sm:$0xff]
    %v27 = vld [vmem:[%s1 + $0x48] sm:$0xff]
    %v28 = vld [vmem:[%s1 + $0x50] sm:$0xff]
    %v29 = vld [vmem:[%s1 + $0x58] sm:$0xff]
    %v30 = vld [vmem:[%s1 + $0x60] sm:$0xff]
    %v31 = vld [vmem:[%s1 + $0x68] sm:$0xff]
    %v32 = vld [vmem:[%s1 + $0x70] sm:$0xff]
    %v33 = vld [vmem:[%s1 + $0x78] sm:$0xff]
    %v34 = vld [vmem:[%s1 + $0x80] sm:$0xff]
    %v35 = vld [vmem:[%s1 + $0x88] sm:$0xff]
    %v36 = vld [vmem:[%s1 + $0x90] sm:$0xff]
    %v37 = vld [vmem:[%s1 + $0x98] sm:$0xff]
    %v38 = vld [vmem:[%s1 + $0xa0] sm:$0xff]
    %v39 = vld [vmem:[%s1 + $0xa8] sm:$0xff]
    %v40 = vld [vmem:[%s1 + $0xb0] sm:$0xff]
    %v41 = vld [vmem:[%s1 + $0xb8] sm:$0xff]
    %v42 = vld [vmem:[%s1 + $0xc0] sm:$0xff]
    %v43 = vld [vmem:[%s1 + $0xc8] sm:$0xff]
    %v44 = vld [vmem:[%s1 + $0xd0] sm:$0xff]
    %v45 = vld [vmem:[%s1 + $0xd8] sm:$0xff]
    %v46 = vld [vmem:[%s1 + $0xe0] sm:$0xff]
    %v47 = vld [vmem:[%s1 + $0xe8] sm:$0xff]
    %v48 = vld [vmem:[%s1 + $0xf0] sm:$0xff]
    %v49 = vld [vmem:[%s1 + $0xf8] sm:$0xff]
    %v50 = vld [vmem:[%s1 + $0x100] sm:$0xff]
    %v51 = vld [vmem:[%s1 + $0x108] sm:$0xff]
    %v52 = vld [vmem:[%s1 + $0x110] sm:$0xff]
    %v53 = vld [vmem:[%s1 + $0x118] sm:$0xff]
    %v54 = vld [vmem:[%s1 + $0x120] sm:$0xff]
    %v55 = vld [vmem:[%s1 + $0x128] sm:$0xff]
    %v56 = vld [vmem:[%s1 + $0x130] sm:$0xff]
    %v57 = vld [vmem:[%s1 + $0x138] sm:$0xff]
    %v58 = vld [vmem:[%s1 + $0x140] sm:$0xff]
    %v59 = vld [vmem:[%s1 + $0x148] sm:$0xff]
    %v60 = vld [vmem:[%s1 + $0x150] sm:$0xff]
    %v61 = vld [vmem:[%s1 + $0x158] sm:$0xff]
    %v62 = vld [vmem:[%s1 + $0x160] sm:$0xff]
    %v63 = vld [vmem:[%s1 + $0x168] sm:$0xff]
    %v64 = vld [vmem:[%s1 + $0x170] sm:$0xff]
    %v65 = vld [vmem:[%s1 + $0x178] sm:$0xff]
    %v66 = vld [vmem:[%s1 + $0x180] sm:$0xff]
    %v67 = vld [vmem:[%s1 + $0x188] sm:$0xff]
    %v68 = vld [vmem:[%s1 + $0x190] sm:$0xff]
    %v69 = vld [vmem:[%s1 + $0x198] sm:$0xff]
    %v70 = vld [vmem:[%s1 + $0x1a0] sm:$0xff]
    %v71 = vld [vmem:[%s1 + $0x1a8] sm:$0xff]
    %v72 = vld [vmem:[%s1 + $0x1b0] sm:$0xff]
    %v73 = vld [vmem:[%s1 + $0x1b8] sm:$0xff]
    %v74 = vld [vmem:[%s1 + $0x1c0] sm:$0xff]
    %v75 = vld [vmem:[%s1 + $0x1c8] sm:$0xff]
    %v76 = vld [vmem:[%s1 + $0x1d0] sm:$0xff]
    %v77 = vld [vmem:[%s1 + $0x1d8] sm:$0xff]
    %v78 = vld [vmem:[%s1 + $0x1e0] sm:$0xff]
    %v79 = vld [vmem:[%s1 + $0x1e8] sm:$0xff]
    %v80 = vld [vmem:[%s1 + $0x1f0] sm:$0xff]
    %v81 = vld [vmem:[%s1 + $0x1f8] sm:$0xff]
    %v82 = vld [vmem:[%s1 + $0x200] sm:$0xff]
    %v83 = vld [vmem:[%s1 + $0x208] sm:$0xff]
    %v84 = vld [vmem:[%s1 + $0x210] sm:$0xff]
    %v85 = vld [vmem:[%s1 + $0x218] sm:$0xff]
    %v86 = vld [vmem:[%s1 + $0x220] sm:$0xff]
    %v87 = vld [vmem:[%s1 + $0x228] sm:$0xff]
    %v88 = vld [vmem:[%s1 + $0x230] sm:$0xff]
    %v89 = vld [vmem:[%s1 + $0x238] sm:$0xff]
    %v90 = vld [vmem:[%s1 + $0x240] sm:$0xff]
    %v91 = vld [vmem:[%s1 + $0x248] sm:$0xff]
    %v92 = vld [vmem:[%s1 + $0x250] sm:$0xff]
    %v93 = vld [vmem:[%s1 + $0x258] sm:$0xff]
    %v94 = vld [vmem:[%s1 + $0x260] sm:$0xff]
    %v95 = vld [vmem:[%s1 + $0x268] sm:$0xff]
    %v96 = vld [vmem:[%s1 + $0x270] sm:$0xff]
    %v97 = vld [vmem:[%s1 + $0x278] sm:$0xff]
    %v98 = vld [vmem:[%s1 + $0x280] sm:$0xff]
    %v99 = vld [vmem:[%s1 + $0x288] sm:$0xff]
    %v100 = vld [vmem:[%s1 + $0x290] sm:$0xff]
    %v101 = vld [vmem:[%s1 + $0x298] sm:$0xff]
    %v102 = vld [vmem:[%s1 + $0x2a0] sm:$0xff]
    %v103 = vld [vmem:[%s1 + $0x2a8] sm:$0xff]
    %v104 = vld [vmem:[%s1 + $0x2b0] sm:$0xff]
    %v105 = vld [vmem:[%s1 + $0x2b8] sm:$0xff]
    %v106 = vld [vmem:[%s1 + $0x2c0] sm:$0xff]
    %v107 = vld [vmem:[%s1 + $0x2c8] sm:$0xff]
    %v108 = vld [vmem:[%s1 + $0x2d0] sm:$0xff]
    %v109 = vld [vmem:[%s1 + $0x2d8] sm:$0xff]
    %v110 = vld [vmem:[%s1 + $0x2e0] sm:$0xff]
    %v111 = vld [vmem:[%s1 + $0x2e8] sm:$0xff]
    %v112 = vld [vmem:[%s1 + $0x2f0] sm:$0xff]
    %v113 = vld [vmem:[%s1 + $0x2f8] sm:$0xff]
    %114 = vmatprep.subr.mxu0 %v19
    %115 = vmatpush1.msra.mxu0 %v18
    %116 = vmatprep.subr.mxu0 %v21
    %117 = vmatpush1.msra.mxu0 %v20
    %118 = vmatprep.subr.mxu0 %v23
    %119 = vmatpush1.msra.mxu0 %v22
    %120 = vmatprep.subr.mxu0 %v25
    %121 = vmatpush1.msra.mxu0 %v24
    %122 = vmatprep.subr.mxu0 %v27
    %123 = vmatpush1.msra.mxu0 %v26
    %124 = vmatprep.subr.mxu0 %v29
    %125 = vmatpush1.msra.mxu0 %v28
    %126 = vmatprep.subr.mxu0 %v31
    %127 = vmatpush1.msra.mxu0 %v30
    %128 = vmatprep.subr.mxu0 %v33
    %129 = vmatpush1.msra.mxu0 %v32
    %130 = vmatprep.subr.mxu0 %v35
    %131 = vmatpush1.msra.mxu0 %v34
    %132 = vmatprep.subr.mxu0 %v37
    %133 = vmatpush1.msra.mxu0 %v36
    %134 = vmatprep.subr.mxu0 %v39
    %135 = vmatpush1.msra.mxu0 %v38
    %136 = vmatprep.subr.mxu0 %v41
    %137 = vmatpush1.msra.mxu0 %v40
    %138 = vmatprep.subr.mxu0 %v43
    %139 = vmatpush1.msra.mxu0 %v42
    %140 = vmatprep.subr.mxu0 %v45
    %141 = vmatpush1.msra.mxu0 %v44
    %142 = vmatprep.subr.mxu0 %v47
    %143 = vmatpush1.msra.mxu0 %v46
    %144 = vmatprep.subr.mxu0 %v49
    %145 = vmatpush1.msra.mxu0 %v48
    %146 = vmatprep.subr.mxu0 %v51
    %147 = vmatpush1.msra.mxu0 %v50
    %148 = vmatprep.subr.mxu0 %v53
    %149 = vmatpush1.msra.mxu0 %v52
    %150 = vmatprep.subr.mxu0 %v55
    %151 = vmatpush1.msra.mxu0 %v54
    %152 = vmatprep.subr.mxu0 %v57
    %153 = vmatpush1.msra.mxu0 %v56
    %154 = vmatprep.subr.mxu0 %v59
    %155 = vmatpush1.msra.mxu0 %v58
    %156 = vmatprep.subr.mxu0 %v61
    %157 = vmatpush1.msra.mxu0 %v60
    %158 = vmatprep.subr.mxu0 %v63
    %159 = vmatpush1.msra.mxu0 %v62
    %160 = vmatprep.subr.mxu0 %v65
    %161 = vmatpush1.msra.mxu0 %v64
    %162 = vmatprep.subr.mxu0 %v67
    %163 = vmatpush1.msra.mxu0 %v66
    %164 = vmatprep.subr.mxu0 %v69
    %165 = vmatpush1.msra.mxu0 %v68
    %166 = vmatprep.subr.mxu0 %v71
    %167 = vmatpush1.msra.mxu0 %v70
    %168 = vmatprep.subr.mxu0 %v73
    %169 = vmatpush1.msra.mxu0 %v72
    %170 = vmatprep.subr.mxu0 %v75
    %171 = vmatpush1.msra.mxu0 %v74
    %172 = vmatprep.subr.mxu0 %v77
    %173 = vmatpush1.msra.mxu0 %v76
    %174 = vmatprep.subr.mxu0 %v79
    %175 = vmatpush1.msra.mxu0 %v78
    %176 = vmatprep.subr.mxu0 %v81
    %177 = vmatpush1.msra.mxu0 %v80
    %178 = vmatprep.mubr.f32.mxu0 %v13
    %179 = vmatmul.mubr.f32.gmra.mrb[0].mxu0 %v12
    %v180 = vpop.f32.mrb[0].mxu0
    %v181 = vadd.f32 0.0, %v180
    %v182 = vpop.f32.mrb[0].mxu0
    %v183 = vadd.f32 0.0, %v182
    %184 = vmatprep.mubr.f32.mxu0 %v16
    %185 = vmatmul.mubr.f32.gmra.mrb[0].mxu0 %v15
    %v186 = vpop.f32.mrb[0].mxu0
    %v187 = vadd.f32 0.0, %v186
    %v188 = vpop.f32.mrb[0].mxu0
    %v189 = vadd.f32 0.0, %v188
    %190 = vdwg.mxu0
    %191 = vmatprep.subr.mxu0 %v83
    %192 = vmatpush1.msra.mxu0 %v82
    %193 = vmatprep.subr.mxu0 %v85
    %194 = vmatpush1.msra.mxu0 %v84
    %195 = vmatprep.subr.mxu0 %v87
    %196 = vmatpush1.msra.mxu0 %v86
    %197 = vmatprep.subr.mxu0 %v89
    %198 = vmatpush1.msra.mxu0 %v88
    %199 = vmatprep.subr.mxu0 %v91
    %200 = vmatpush1.msra.mxu0 %v90
    %201 = vmatprep.subr.mxu0 %v93
    %202 = vmatpush1.msra.mxu0 %v92
    %203 = vmatprep.subr.mxu0 %v95
    %204 = vmatpush1.msra.mxu0 %v94
    %205 = vmatprep.subr.mxu0 %v97
    %206 = vmatpush1.msra.mxu0 %v96
    %207 = vmatprep.subr.mxu0 %v99
    %208 = vmatpush1.msra.mxu0 %v98
    %209 = vmatprep.subr.mxu0 %v101
    %210 = vmatpush1.msra.mxu0 %v100
    %211 = vmatprep.subr.mxu0 %v103
    %212 = vmatpush1.msra.mxu0 %v102
    %213 = vmatprep.subr.mxu0 %v105
    %214 = vmatpush1.msra.mxu0 %v104
    %215 = vmatprep.subr.mxu0 %v107
    %216 = vmatpush1.msra.mxu0 %v106
    %217 = vmatprep.subr.mxu0 %v109
    %218 = vmatpush1.msra.mxu0 %v108
    %219 = vmatprep.subr.mxu0 %v111
    %220 = vmatpush1.msra.mxu0 %v110
    %221 = vmatprep.subr.mxu0 %v113
    %222 = vmatpush1.msra.mxu0 %v112
    %223 = vmatprep.subr.mxu0 0.0
    %224 = vmatpush1.msra.mxu0 0.0
    %225 = vmatprep.subr.mxu0 0.0
    %226 = vmatpush1.msra.mxu0 0.0
    %227 = vmatprep.subr.mxu0 0.0
    %228 = vmatpush1.msra.mxu0 0.0
    %229 = vmatprep.subr.mxu0 0.0
    %230 = vmatpush1.msra.mxu0 0.0
    %231 = vmatprep.subr.mxu0 0.0
    %232 = vmatpush1.msra.mxu0 0.0
    %233 = vmatprep.subr.mxu0 0.0
    %234 = vmatpush1.msra.mxu0 0.0
    %235 = vmatprep.subr.mxu0 0.0
    %236 = vmatpush1.msra.mxu0 0.0
    %237 = vmatprep.subr.mxu0 0.0
    %238 = vmatpush1.msra.mxu0 0.0
    %239 = vmatprep.subr.mxu0 0.0
    %240 = vmatpush1.msra.mxu0 0.0
    %241 = vmatprep.subr.mxu0 0.0
    %242 = vmatpush1.msra.mxu0 0.0
    %243 = vmatprep.subr.mxu0 0.0
    %244 = vmatpush1.msra.mxu0 0.0
    %245 = vmatprep.subr.mxu0 0.0
    %246 = vmatpush1.msra.mxu0 0.0
    %247 = vmatprep.subr.mxu0 0.0
    %248 = vmatpush1.msra.mxu0 0.0
    %249 = vmatprep.subr.mxu0 0.0
    %250 = vmatpush1.msra.mxu0 0.0
    %251 = vmatprep.subr.mxu0 0.0
    %252 = vmatpush1.msra.mxu0 0.0
    %253 = vmatprep.subr.mxu0 0.0
    %254 = vmatpush1.msra.mxu0 0.0
    %255 = vmatprep.mubr.f32.mxu0 0.0
    %256 = vmatmul.mubr.f32.gmra.mrb[0].mxu0 %v14
    %v257 = vpop.f32.mrb[0].mxu0
    %v258 = vadd.f32 %v181, %v257
    %v259 = vpop.f32.mrb[0].mxu0
    %v260 = vadd.f32 %v183, %v259
    %261 = vmatprep.mubr.f32.mxu0 0.0
    %262 = vmatmul.mubr.f32.gmra.mrb[0].mxu0 %v17
    %v263 = vpop.f32.mrb[0].mxu0
    %v264 = vadd.f32 %v187, %v263
    %v265 = vpop.f32.mrb[0].mxu0
    %v266 = vadd.f32 %v189, %v265
    %267 = vdwg.mxu0
    %269 = vrot.lane.b32.xlu0 %v258, 64
    %v270 = vpop.permute.xlu0 %269
    %vm271 = vcmask 523264
    %v272 = vsel %vm271, %v258, 0
    %v274 = vsel %vm271, %v270, 0
    %276 = vmatprep.subr.mxu0 0.0
    %277 = vmatpush1.xpose.msra.mxu0 %v274
    %278 = vmatprep.subr.mxu0 0.0
    %279 = vmatpush1.xpose.msra.mxu0 0.0
    %280 = vmatprep.subr.mxu0 0.0
    %281 = vmatpush1.xpose.msra.mxu0 0.0
    %282 = vmatprep.subr.mxu0 0.0
    %283 = vmatpush1.xpose.msra.mxu0 0.0
    %284 = vmatprep.subr.mxu0 0.0
    %285 = vmatpush1.xpose.msra.mxu0 0.0
    %286 = vmatprep.subr.mxu0 0.0
    %287 = vmatpush1.xpose.msra.mxu0 0.0
    %288 = vmatprep.subr.mxu0 0.0
    %289 = vmatpush1.xpose.msra.mxu0 0.0
    %290 = vmatprep.subr.mxu0 0.0
    %291 = vmatpush1.xpose.msra.mxu0 0.0
    %292 = vmatprep.subr.mxu0 0.0
    %293 = vmatpush1.xpose.msra.mxu0 0.0
    %294 = vmatprep.subr.mxu0 0.0
    %295 = vmatpush1.xpose.msra.mxu0 0.0
    %296 = vmatprep.subr.mxu0 0.0
    %297 = vmatpush1.xpose.msra.mxu0 0.0
    %298 = vmatprep.subr.mxu0 0.0
    %299 = vmatpush1.xpose.msra.mxu0 0.0
    %300 = vmatprep.subr.mxu0 0.0
    %301 = vmatpush1.xpose.msra.mxu0 0.0
    %302 = vmatprep.subr.mxu0 0.0
    %303 = vmatpush1.xpose.msra.mxu0 0.0
    %304 = vmatprep.subr.mxu0 0.0
    %305 = vmatpush1.xpose.msra.mxu0 0.0
    %306 = vmatprep.subr.mxu0 0.0
    %307 = vmatpush1.xpose.msra.mxu0 0.0
    %308 = vmatprep.subr.mxu0 0.0
    %309 = vmatpush1.xpose.msra.mxu0 0.0
    %310 = vmatprep.subr.mxu0 0.0
    %311 = vmatpush1.xpose.msra.mxu0 0.0
    %312 = vmatprep.subr.mxu0 0.0
    %313 = vmatpush1.xpose.msra.mxu0 0.0
    %314 = vmatprep.subr.mxu0 0.0
    %315 = vmatpush1.xpose.msra.mxu0 0.0
    %316 = vmatprep.subr.mxu0 0.0
    %317 = vmatpush1.xpose.msra.mxu0 0.0
    %318 = vmatprep.subr.mxu0 0.0
    %319 = vmatpush1.xpose.msra.mxu0 0.0
    %320 = vmatprep.subr.mxu0 0.0
    %321 = vmatpush1.xpose.msra.mxu0 0.0
    %322 = vmatprep.subr.mxu0 0.0
    %323 = vmatpush1.xpose.msra.mxu0 0.0
    %324 = vmatprep.subr.mxu0 0.0
    %325 = vmatpush1.xpose.msra.mxu0 0.0
    %326 = vmatprep.subr.mxu0 0.0
    %327 = vmatpush1.xpose.msra.mxu0 0.0
    %328 = vmatprep.subr.mxu0 0.0
    %329 = vmatpush1.xpose.msra.mxu0 0.0
    %330 = vmatprep.subr.mxu0 0.0
    %331 = vmatpush1.xpose.msra.mxu0 0.0
    %332 = vmatprep.subr.mxu0 0.0
    %333 = vmatpush1.xpose.msra.mxu0 0.0
    %334 = vmatprep.subr.mxu0 0.0
    %335 = vmatpush1.xpose.msra.mxu0 0.0
    %336 = vmatprep.subr.mxu0 0.0
    %337 = vmatpush1.xpose.msra.mxu0 0.0
    %338 = vmatprep.subr.mxu0 0.0
    %339 = vmatpush1.xpose.msra.mxu0 0.0
    %340 = vmatprep.mubr.f32.mxu0 0.0
    %341 = vmatmul.mubr.f32.gmra.mrb[0].mxu0 %v272
    %v342 = vpop.f32.mrb[0].mxu0
    %v343 = vadd.f32 0.0, %v342
    %v344 = vpop.f32.mrb[0].mxu0
    %345 = vdwg.mxu0
    %347 = vrot.lane.b32.xlu0 %v264, 64
    %v348 = vpop.permute.xlu0 %347
    %v349 = vsel %vm271, %v264, 0
    %v351 = vsel %vm271, %v348, 0
    %353 = vmatprep.subr.mxu0 0.0
    %354 = vmatpush1.xpose.msra.mxu0 %v351
    %355 = vmatprep.subr.mxu0 0.0
    %356 = vmatpush1.xpose.msra.mxu0 0.0
    %357 = vmatprep.subr.mxu0 0.0
    %358 = vmatpush1.xpose.msra.mxu0 0.0
    %359 = vmatprep.subr.mxu0 0.0
    %360 = vmatpush1.xpose.msra.mxu0 0.0
    %361 = vmatprep.subr.mxu0 0.0
    %362 = vmatpush1.xpose.msra.mxu0 0.0
    %363 = vmatprep.subr.mxu0 0.0
    %364 = vmatpush1.xpose.msra.mxu0 0.0
    %365 = vmatprep.subr.mxu0 0.0
    %366 = vmatpush1.xpose.msra.mxu0 0.0
    %367 = vmatprep.subr.mxu0 0.0
    %368 = vmatpush1.xpose.msra.mxu0 0.0
    %369 = vmatprep.subr.mxu0 0.0
    %370 = vmatpush1.xpose.msra.mxu0 0.0
    %371 = vmatprep.subr.mxu0 0.0
    %372 = vmatpush1.xpose.msra.mxu0 0.0
    %373 = vmatprep.subr.mxu0 0.0
    %374 = vmatpush1.xpose.msra.mxu0 0.0
    %375 = vmatprep.subr.mxu0 0.0
    %376 = vmatpush1.xpose.msra.mxu0 0.0
    %377 = vmatprep.subr.mxu0 0.0
    %378 = vmatpush1.xpose.msra.mxu0 0.0
    %379 = vmatprep.subr.mxu0 0.0
    %380 = vmatpush1.xpose.msra.mxu0 0.0
    %381 = vmatprep.subr.mxu0 0.0
    %382 = vmatpush1.xpose.msra.mxu0 0.0
    %383 = vmatprep.subr.mxu0 0.0
    %384 = vmatpush1.xpose.msra.mxu0 0.0
    %385 = vmatprep.subr.mxu0 0.0
    %386 = vmatpush1.xpose.msra.mxu0 0.0
    %387 = vmatprep.subr.mxu0 0.0
    %388 = vmatpush1.xpose.msra.mxu0 0.0
    %389 = vmatprep.subr.mxu0 0.0
    %390 = vmatpush1.xpose.msra.mxu0 0.0
    %391 = vmatprep.subr.mxu0 0.0
    %392 = vmatpush1.xpose.msra.mxu0 0.0
    %393 = vmatprep.subr.mxu0 0.0
    %394 = vmatpush1.xpose.msra.mxu0 0.0
    %395 = vmatprep.subr.mxu0 0.0
    %396 = vmatpush1.xpose.msra.mxu0 0.0
    %397 = vmatprep.subr.mxu0 0.0
    %398 = vmatpush1.xpose.msra.mxu0 0.0
    %399 = vmatprep.subr.mxu0 0.0
    %400 = vmatpush1.xpose.msra.mxu0 0.0
    %401 = vmatprep.subr.mxu0 0.0
    %402 = vmatpush1.xpose.msra.mxu0 0.0
    %403 = vmatprep.subr.mxu0 0.0
    %404 = vmatpush1.xpose.msra.mxu0 0.0
    %405 = vmatprep.subr.mxu0 0.0
    %406 = vmatpush1.xpose.msra.mxu0 0.0
    %407 = vmatprep.subr.mxu0 0.0
    %408 = vmatpush1.xpose.msra.mxu0 0.0
    %409 = vmatprep.subr.mxu0 0.0
    %410 = vmatpush1.xpose.msra.mxu0 0.0
    %411 = vmatprep.subr.mxu0 0.0
    %412 = vmatpush1.xpose.msra.mxu0 0.0
    %413 = vmatprep.subr.mxu0 0.0
    %414 = vmatpush1.xpose.msra.mxu0 0.0
    %415 = vmatprep.subr.mxu0 0.0
    %416 = vmatpush1.xpose.msra.mxu0 0.0
    %417 = vmatprep.mubr.f32.mxu0 0.0
    %418 = vmatmul.mubr.f32.gmra.mrb[0].mxu0 %v349
    %v419 = vpop.f32.mrb[0].mxu0
    %v420 = vadd.f32 0.0, %v419
    %v421 = vpop.f32.mrb[0].mxu0
    %422 = vdwg.mxu0
    %v423 = vlaneseq
    %v424 = vshrl.u32 %v423, 7
    %v425 = vlaneseq
    %v426 = vand.u32 %v425, 127
    %vm427 = vcmp.le.s32.totalorder %v426, %v424
    %v428 = vsel %vm427, 1, 0
    %vm429 = vcmp.eq.s32.totalorder %v428, 1
    %v430 = vsel %vm429, %v343, -inf
    %v431 = vsel %vm429, %v420, -inf
    %vm432 = vcmask 64512
    %v433 = vsel %vm432, %v430, -inf
    %434 = vmax.xlane.f32.xlu0 %v433
    %v435 = vpop.xlane.xlu0 %434
    %v436 = vsel %vm432, %v431, -inf
    %437 = vmax.xlane.f32.xlu0 %v436
    %v438 = vpop.xlane.xlu0 %437
    %v439 = vsub.f32 %v430, %v435
    %v440 = vsub.f32 %v431, %v438
    %v441 = vmul.f32 %v439, 1.442695
    %v442 = vpow.pop %v441
    %v443 = vmul.f32 %v440, 1.442695
    %v444 = vpow.pop %v443
    %v445 = vsel %vm432, %v442, 0.0
    %446 = vadd.xlane.f32.xlu0 %v445
    %v447 = vpop.xlane.xlu0 %446
    %v448 = vsel %vm432, %v444, 0.0
    %449 = vadd.xlane.f32.xlu0 %v448
    %v450 = vpop.xlane.xlu0 %449
    %v451 = vrcp.pop %v447
    %v452 = vrcp.pop %v450
    %v453 = vmul.f32 %v442, %v451
    %v454 = vmul.f32 %v444, %v452
    %v456 = vsel %vm432, %v453, 0
    %458 = vmatprep.subr.mxu0 0.0
    %459 = vmatpush1.msra.mxu0 %v260
    %460 = vmatprep.subr.mxu0 0.0
    %461 = vmatpush1.msra.mxu0 0.0
    %462 = vmatprep.subr.mxu0 0.0
    %463 = vmatpush1.msra.mxu0 0.0
    %464 = vmatprep.subr.mxu0 0.0
    %465 = vmatpush1.msra.mxu0 0.0
    %466 = vmatprep.subr.mxu0 0.0
    %467 = vmatpush1.msra.mxu0 0.0
    %468 = vmatprep.subr.mxu0 0.0
    %469 = vmatpush1.msra.mxu0 0.0
    %470 = vmatprep.subr.mxu0 0.0
    %471 = vmatpush1.msra.mxu0 0.0
    %472 = vmatprep.subr.mxu0 0.0
    %473 = vmatpush1.msra.mxu0 0.0
    %474 = vmatprep.subr.mxu0 0.0
    %475 = vmatpush1.msra.mxu0 0.0
    %476 = vmatprep.subr.mxu0 0.0
    %477 = vmatpush1.msra.mxu0 0.0
    %478 = vmatprep.subr.mxu0 0.0
    %479 = vmatpush1.msra.mxu0 0.0
    %480 = vmatprep.subr.mxu0 0.0
    %481 = vmatpush1.msra.mxu0 0.0
    %482 = vmatprep.subr.mxu0 0.0
    %483 = vmatpush1.msra.mxu0 0.0
    %484 = vmatprep.subr.mxu0 0.0
    %485 = vmatpush1.msra.mxu0 0.0
    %486 = vmatprep.subr.mxu0 0.0
    %487 = vmatpush1.msra.mxu0 0.0
    %488 = vmatprep.subr.mxu0 0.0
    %489 = vmatpush1.msra.mxu0 0.0
    %490 = vmatprep.subr.mxu0 0.0
    %491 = vmatpush1.msra.mxu0 0.0
    %492 = vmatprep.subr.mxu0 0.0
    %493 = vmatpush1.msra.mxu0 0.0
    %494 = vmatprep.subr.mxu0 0.0
    %495 = vmatpush1.msra.mxu0 0.0
    %496 = vmatprep.subr.mxu0 0.0
    %497 = vmatpush1.msra.mxu0 0.0
    %498 = vmatprep.subr.mxu0 0.0
    %499 = vmatpush1.msra.mxu0 0.0
    %500 = vmatprep.subr.mxu0 0.0
    %501 = vmatpush1.msra.mxu0 0.0
    %502 = vmatprep.subr.mxu0 0.0
    %503 = vmatpush1.msra.mxu0 0.0
    %504 = vmatprep.subr.mxu0 0.0
    %505 = vmatpush1.msra.mxu0 0.0
    %506 = vmatprep.subr.mxu0 0.0
    %507 = vmatpush1.msra.mxu0 0.0
    %508 = vmatprep.subr.mxu0 0.0
    %509 = vmatpush1.msra.mxu0 0.0
    %510 = vmatprep.subr.mxu0 0.0
    %511 = vmatpush1.msra.mxu0 0.0
    %512 = vmatprep.subr.mxu0 0.0
    %513 = vmatpush1.msra.mxu0 0.0
    %514 = vmatprep.subr.mxu0 0.0
    %515 = vmatpush1.msra.mxu0 0.0
    %516 = vmatprep.subr.mxu0 0.0
    %517 = vmatpush1.msra.mxu0 0.0
    %518 = vmatprep.subr.mxu0 0.0
    %519 = vmatpush1.msra.mxu0 0.0
    %520 = vmatprep.subr.mxu0 0.0
    %521 = vmatpush1.msra.mxu0 0.0
    %522 = vmatprep.mubr.f32.mxu0 0.0
    %523 = vmatmul.mubr.f32.gmra.mrb[0].mxu0 %v456
    %v524 = vpop.f32.mrb[0].mxu0
    %v525 = vadd.f32 0.0, %v524
    %v526 = vpop.f32.mrb[0].mxu0
    %527 = vdwg.mxu0
    %v529 = vsel %vm432, %v454, 0
    %531 = vmatprep.subr.mxu0 0.0
    %532 = vmatpush1.msra.mxu0 %v266
    %533 = vmatprep.subr.mxu0 0.0
    %534 = vmatpush1.msra.mxu0 0.0
    %535 = vmatprep.subr.mxu0 0.0
    %536 = vmatpush1.msra.mxu0 0.0
    %537 = vmatprep.subr.mxu0 0.0
    %538 = vmatpush1.msra.mxu0 0.0
    %539 = vmatprep.subr.mxu0 0.0
    %540 = vmatpush1.msra.mxu0 0.0
    %541 = vmatprep.subr.mxu0 0.0
    %542 = vmatpush1.msra.mxu0 0.0
    %543 = vmatprep.subr.mxu0 0.0
    %544 = vmatpush1.msra.mxu0 0.0
    %545 = vmatprep.subr.mxu0 0.0
    %546 = vmatpush1.msra.mxu0 0.0
    %547 = vmatprep.subr.mxu0 0.0
    %548 = vmatpush1.msra.mxu0 0.0
    %549 = vmatprep.subr.mxu0 0.0
    %550 = vmatpush1.msra.mxu0 0.0
    %551 = vmatprep.subr.mxu0 0.0
    %552 = vmatpush1.msra.mxu0 0.0
    %553 = vmatprep.subr.mxu0 0.0
    %554 = vmatpush1.msra.mxu0 0.0
    %555 = vmatprep.subr.mxu0 0.0
    %556 = vmatpush1.msra.mxu0 0.0
    %557 = vmatprep.subr.mxu0 0.0
    %558 = vmatpush1.msra.mxu0 0.0
    %559 = vmatprep.subr.mxu0 0.0
    %560 = vmatpush1.msra.mxu0 0.0
    %561 = vmatprep.subr.mxu0 0.0
    %562 = vmatpush1.msra.mxu0 0.0
    %563 = vmatprep.subr.mxu0 0.0
    %564 = vmatpush1.msra.mxu0 0.0
    %565 = vmatprep.subr.mxu0 0.0
    %566 = vmatpush1.msra.mxu0 0.0
    %567 = vmatprep.subr.mxu0 0.0
    %568 = vmatpush1.msra.mxu0 0.0
    %569 = vmatprep.subr.mxu0 0.0
    %570 = vmatpush1.msra.mxu0 0.0
    %571 = vmatprep.subr.mxu0 0.0
    %572 = vmatpush1.msra.mxu0 0.0
    %573 = vmatprep.subr.mxu0 0.0
    %574 = vmatpush1.msra.mxu0 0.0
    %575 = vmatprep.subr.mxu0 0.0
    %576 = vmatpush1.msra.mxu0 0.0
    %577 = vmatprep.subr.mxu0 0.0
    %578 = vmatpush1.msra.mxu0 0.0
    %579 = vmatprep.subr.mxu0 0.0
    %580 = vmatpush1.msra.mxu0 0.0
    %581 = vmatprep.subr.mxu0 0.0
    %582 = vmatpush1.msra.mxu0 0.0
    %583 = vmatprep.subr.mxu0 0.0
    %584 = vmatpush1.msra.mxu0 0.0
    %585 = vmatprep.subr.mxu0 0.0
    %586 = vmatpush1.msra.mxu0 0.0
    %587 = vmatprep.subr.mxu0 0.0
    %588 = vmatpush1.msra.mxu0 0.0
    %589 = vmatprep.subr.mxu0 0.0
    %590 = vmatpush1.msra.mxu0 0.0
    %591 = vmatprep.subr.mxu0 0.0
    %592 = vmatpush1.msra.mxu0 0.0
    %593 = vmatprep.subr.mxu0 0.0
    %594 = vmatpush1.msra.mxu0 0.0
    %595 = vmatprep.mubr.f32.mxu0 0.0
    %596 = vmatmul.mubr.f32.gmra.mrb[0].mxu0 %v529
    %v597 = vpop.f32.mrb[0].mxu0
    %v598 = vadd.f32 0.0, %v597
    %v599 = vpop.f32.mrb[0].mxu0
    %600 = vdwg.mxu0
    %601 = vst.msk [vmem:[#allocation2] sm:$0xff] %vm271, %v525
    %602 = vst.msk [vmem:[#allocation2 + $0x8] sm:$0xff] %vm271, %v598
    // Predicated region
    $region10: #{tpu_custom_call.1} parent=1 // pred_check
      _
    $region11: #{tpu_custom_call.1} parent=1 // pred_check_branch
      %604 = sbr.rel (0) target = $region13
    $region12: #{tpu_custom_call.1} parent=1 // pred_region
      %s606 = ssub.s32 256, 256
      %607 = vsyncadd [#allocation3], %s606
      %s608 = sshll.u32 [#allocation2], 4
      %s609 = int_to_ptr.vmem [resolvable:$true] %s608
      %614 = dma.vmem_to_hbm [thread:$0]  %s609, 256, %s2, [#allocation3], 128, 128, 8
    $region13: #{tpu_custom_call.1} parent=1 // pred_fallthru
      _
    // Predicated region
    $region14: #{tpu_custom_call.1} parent=1 // pred_check
      _
    $region15: #{tpu_custom_call.1} parent=1 // pred_check_branch
      %616 = sbr.rel (0) target = $region17
    $region16: #{tpu_custom_call.1} parent=1 // pred_region
      %617 = dma.done [#allocation3], 256
    $region17: #{tpu_custom_call.1} parent=1 // pred_fallthru
      _
    %618 = vsyncpa [#allocation3], 1

</llo_original>
